<compile_context>
chip_gen: v7x
topology: tpu7x:2x2x1
jax: 0.10.0
libtpu: 0.0.40
codegen_flags: <defaults>
</compile_context>

<pallas_src>
import functools
import math

import jax
import jax.numpy as jnp
from jax import lax
from jax.experimental import pallas as pl
from jax.experimental.pallas import tpu as pltpu


def _round_up(x, m):
    return ((x + m - 1) // m) * m


def _conv1d_tap_kernel(*refs, taps, dilation, tm):
    """One (batch, L-tile) step: out[l, :] = sum_k x[l + k*dil, :] @ w[k] + b.

    refs (taps > 1): x0_ref (1, TM, Cr), x1_ref (1, H, Cr) halo rows,
                     w_ref (taps, Cr, Cout_pad), b_ref (1, Cout_pad),
                     o_ref (1, Cout_pad, TM)
    refs (taps == 1): same without x1_ref.
    """
    if taps > 1:
        x0_ref, x1_ref, w_ref, b_ref, o_ref = refs
        a = jnp.concatenate([x0_ref[0], x1_ref[0]], axis=0)   # (TM + H, Cr)
    else:
        x0_ref, w_ref, b_ref, o_ref = refs
        a = x0_ref[0]                                         # (TM, Cr)

    cr = a.shape[1]
    acc = jnp.dot(lax.slice(a, (0, 0), (tm, cr)), w_ref[0],
                  preferred_element_type=jnp.float32)
    for k in range(1, taps):
        ak = lax.slice(a, (k * dilation, 0), (k * dilation + tm, cr))
        acc = acc + jnp.dot(ak, w_ref[k], preferred_element_type=jnp.float32)

    acc = acc + b_ref[...]                                    # bias broadcast
    # Transposed store: (Cout_pad, TM) tile -> kernel writes NCL layout
    # directly, lane-dense along L_out (no post-kernel transpose pass).
    o_ref[0] = acc.T.astype(o_ref.dtype)


def conv1d_mem_forward(x, weight, bias=None, stride=1, padding=0, dilation=1,
                       compute_dtype=jnp.bfloat16):
    """x: (N, C_in, L) f32; weight: (C_out, C_in, K); bias: (C_out,) or None.

    Matmul operands are cast to `compute_dtype` (bf16 is MXU-native); the
    accumulation is f32.  Pass compute_dtype=jnp.float32 for closer parity
    with PyTorch's f32 conv1d.
    """
    N, C_in, L_in = x.shape
    C_out, _, K = weight.shape
    eff_k = (K - 1) * dilation + 1
    L_pad_len = L_in + 2 * padding
    L_out = (L_pad_len - eff_k) // stride + 1
    assert L_out >= 1, "output length must be positive"

    if bias is None:
        bias = jnp.zeros((C_out,), jnp.float32)

    C_out_pad = _round_up(C_out, 128)
    halo = (K - 1) * dilation

    x_cl = jnp.transpose(x, (0, 2, 1))            # (N, L_in, C_in) channel-last

    fast = (stride == 1) and (halo <= 128)

    if fast:
        taps, Cr = K, C_in
        w_r = jnp.transpose(weight, (2, 1, 0))    # (K, C_in, C_out)
    else:
        # General path: fold taps into the channel dim via per-tap strided
        # slices (no gather), then run the kernel with a single fused tap.
        taps, Cr = 1, K * C_in
        if padding > 0:
            x_cl = jnp.pad(x_cl, ((0, 0), (padding, padding), (0, 0)))
        cols = [lax.slice(x_cl, (0, k * dilation, 0),
                          (N, k * dilation + (L_out - 1) * stride + 1, C_in),
                          (1, stride, 1))
                for k in range(K)]
        x_cl = jnp.concatenate(cols, axis=-1)     # (N, L_out, K*C_in)
        w_r = jnp.transpose(weight, (2, 1, 0)).reshape(1, K * C_in, C_out)

    Cr_pad = _round_up(Cr, 16)                    # bf16 sublane packing

    # --- tile selection: lane/sublane aligned; pad only to what is needed ---
    TM = min(512, _round_up(L_out, 128))
    if N * pl.cdiv(L_out, TM) < 2 and TM > 128:   # keep both v7x cores busy
        TM = max(128, _round_up(TM // 2, 128))

    def vmem_est(tm):
        lane_cr = _round_up(Cr_pad, 128)
        est = 0
        est += 2 * tm * lane_cr * 2               # x0, double-buffered (bf16)
        est += 2 * 128 * lane_cr * 2              # halo block (worst case)
        est += 2 * taps * Cr_pad * C_out_pad * 2  # resident weights
        est += 2 * C_out_pad * tm * 4             # output block, double-buffered
        est += 2 * tm * C_out_pad * 4             # acc + transposed temp
        est += (tm + 128) * lane_cr * 2           # concat temp
        return est + (1 << 20)

    while TM > 128 and vmem_est(TM) > 24 * 2**20:
        TM -= 128

    num_i = pl.cdiv(L_out, TM)
    if fast:
        H = max(8, int(pl.next_power_of_2(max(halo, 1))))  # H | TM, H >= halo
        L_rows = (num_i + 1) * TM                 # exact multiple of TM and H
        pad_lo = padding                          # conv padding folded in here
    else:
        H = 0
        L_rows = num_i * TM
        pad_lo = 0                                # padding already applied

    x_p = jnp.pad(x_cl, ((0, 0),
                         (pad_lo, L_rows - x_cl.shape[1] - pad_lo),
                         (0, Cr_pad - Cr))).astype(compute_dtype)
    w_p = jnp.pad(w_r, ((0, 0), (0, Cr_pad - Cr),
                        (0, C_out_pad - C_out))).astype(compute_dtype)
    b_p = jnp.pad(bias.astype(jnp.float32),
                  (0, C_out_pad - C_out)).reshape(1, C_out_pad)

    kernel = functools.partial(_conv1d_tap_kernel, taps=taps,
                               dilation=dilation, tm=TM)

    in_specs = [pl.BlockSpec((1, TM, Cr_pad), lambda b, i: (b, i, 0))]
    operands = [x_p]
    if taps > 1:
        step = TM // H
        in_specs.append(
            pl.BlockSpec((1, H, Cr_pad), lambda b, i: (b, (i + 1) * step, 0)))
        operands.append(x_p)
    in_specs += [
        pl.BlockSpec((taps, Cr_pad, C_out_pad), lambda b, i: (0, 0, 0)),
        pl.BlockSpec((1, C_out_pad), lambda b, i: (0, 0)),
    ]
    operands += [w_p, b_p]

    est = vmem_est(TM)
    vmem_limit = int(min(max(2 * est, 32 * 2**20), 48 * 2**20))

    cost = pl.CostEstimate(
        flops=2 * N * L_out * C_in * K * C_out,
        transcendentals=0,
        bytes_accessed=(x_p.size * x_p.dtype.itemsize
                        + w_p.size * w_p.dtype.itemsize
                        + b_p.size * 4
                        + N * C_out_pad * num_i * TM * 4),
    )

    out = pl.pallas_call(
        kernel,
        out_shape=jax.ShapeDtypeStruct((N, C_out_pad, num_i * TM), jnp.float32),
        grid_spec=pltpu.PrefetchScalarGridSpec(
            num_scalar_prefetch=0,
            grid=(N, num_i),
            in_specs=in_specs,
            out_specs=pl.BlockSpec((1, C_out_pad, TM), lambda b, i: (b, 0, i)),
        ),
        compiler_params=pltpu.CompilerParams(
            dimension_semantics=("parallel", "parallel"),
            vmem_limit_bytes=vmem_limit,
        ),
        cost_estimate=cost,
    )(*operands)

    return out[:, :C_out, :L_out]                 # (N, C_out, L_out)


def init_conv1d_mem_params(key, in_channels, out_channels, kernel_size):
    """Mimic nn.Conv1d / Conv1dMem reset_parameters (kaiming_uniform a=sqrt(5))."""
    fan_in = in_channels * kernel_size
    bound = 1.0 / math.sqrt(fan_in)
    kw, kb = jax.random.split(key)
    weight = jax.random.uniform(
        kw, (out_channels, in_channels, kernel_size),
        minval=-bound, maxval=bound, dtype=jnp.float32)
    bias = jax.random.uniform(
        kb, (out_channels,), minval=-bound, maxval=bound, dtype=jnp.float32)
    return weight, bias


if __name__ == "__main__":
    # Small shapes consistent with Conv1dMem: input (batch, in_channels, length)
    batch, in_channels, length = 2, 4, 16
    out_channels, kernel_size, stride = 8, 3, 1

    key = jax.random.PRNGKey(0)
    kx, kparam = jax.random.split(key)
    x = jax.random.normal(kx, (batch, in_channels, length), dtype=jnp.float32)
    weight, bias = init_conv1d_mem_params(kparam, in_channels, out_channels,
                                          kernel_size)

    # TODO(synk): SliceMethod / dot_engine memristive bit-slicing has no clean
    # Pallas equivalent here; forward math is the exact conv1d it implements.
    y = conv1d_mem_forward(x, weight, bias, stride=stride)
    jax.block_until_ready(y)

    # Reference check against XLA conv (f32). Kernel uses bf16 operands with
    # f32 accumulation, so compare with a bf16-appropriate tolerance.
    ref = jax.lax.conv_general_dilated(
        x, weight, window_strides=(stride,), padding="VALID",
        dimension_numbers=("NCH", "OIH", "NCH")) + bias[None, :, None]
    L_out = (length - kernel_size) // stride + 1
    assert y.shape == (batch, out_channels, L_out)
    assert jnp.allclose(y, ref, atol=2e-2, rtol=2e-2), \
        "mismatch vs reference conv1d"

    print("KERNEL_OK")
</pallas_src>

<mosaic_0001>
module attributes {stable_mosaic.version = 11 : i64} {
  func.func @_conv1d_tap_kernel(%arg0: i32, %arg1: i32, %arg2: memref<1x128x16xbf16, #tpu.memory_space<vmem>>, %arg3: memref<1x8x16xbf16, #tpu.memory_space<vmem>>, %arg4: memref<3x16x128xbf16, #tpu.memory_space<vmem>>, %arg5: memref<1x128xf32, #tpu.memory_space<vmem>>, %arg6: memref<1x128x128xf32, #tpu.memory_space<vmem>>) attributes {dimension_semantics = [#tpu.dimension_semantics<parallel>, #tpu.dimension_semantics<parallel>], iteration_bounds = array<i64: 2, 1>, scalar_prefetch = 0 : i64, scratch_operands = 0 : i64, tpu.core_type = #tpu.core_type<tc>, window_params = [{transform_indices = @transform_0, window_bounds = array<i64: 1, 128, 16>}, {transform_indices = @transform_1, window_bounds = array<i64: 1, 8, 16>}, {pipeline_mode = #tpu.pipeline_mode<synchronous>, transform_indices = @transform_2, window_bounds = array<i64: 3, 16, 128>}, {pipeline_mode = #tpu.pipeline_mode<synchronous>, transform_indices = @transform_3, window_bounds = array<i64: 1, 128>}, {transform_indices = @transform_4, window_bounds = array<i64: 1, 128, 128>}]} {
    %c0 = arith.constant 0 : index
    %c0_0 = arith.constant 0 : index
    %c0_1 = arith.constant 0 : index
    %0 = vector.load %arg2[%c0, %c0_0, %c0_1] : memref<1x128x16xbf16, #tpu.memory_space<vmem>>, vector<1x128x16xbf16>
    %1 = vector.shape_cast %0 : vector<1x128x16xbf16> to vector<128x16xbf16>
    %c0_2 = arith.constant 0 : index
    %c0_3 = arith.constant 0 : index
    %c0_4 = arith.constant 0 : index
    %2 = vector.load %arg3[%c0_2, %c0_3, %c0_4] : memref<1x8x16xbf16, #tpu.memory_space<vmem>>, vector<1x8x16xbf16>
    %3 = vector.shape_cast %2 : vector<1x8x16xbf16> to vector<8x16xbf16>
    %4 = tpu.concatenate %1, %3 in 0 : vector<128x16xbf16>, vector<8x16xbf16> -> vector<136x16xbf16>
    %5 = vector.extract_strided_slice %4 {offsets = [0, 0], sizes = [128, 16], strides = [1, 1]} : vector<136x16xbf16> to vector<128x16xbf16>
    %c0_5 = arith.constant 0 : index
    %c0_6 = arith.constant 0 : index
    %c0_7 = arith.constant 0 : index
    %6 = vector.load %arg4[%c0_5, %c0_6, %c0_7] : memref<3x16x128xbf16, #tpu.memory_space<vmem>>, vector<1x16x128xbf16>
    %7 = vector.shape_cast %6 : vector<1x16x128xbf16> to vector<16x128xbf16>
    %cst = arith.constant dense<0.000000e+00> : vector<128x128xf32>
    %8 = tpu.matmul %5, %7, %cst {dimension_numbers = #tpu.dot_dimension_numbers<[1], [0], [0], [1], [0, 0, 1, 1], [], []>} : vector<128x16xbf16>, vector<16x128xbf16>, vector<128x128xf32> -> vector<128x128xf32>
    %9 = vector.extract_strided_slice %4 {offsets = [1, 0], sizes = [128, 16], strides = [1, 1]} : vector<136x16xbf16> to vector<128x16xbf16>
    %c1 = arith.constant 1 : index
    %c0_8 = arith.constant 0 : index
    %c0_9 = arith.constant 0 : index
    %10 = vector.load %arg4[%c1, %c0_8, %c0_9] : memref<3x16x128xbf16, #tpu.memory_space<vmem>>, vector<1x16x128xbf16>
    %11 = vector.shape_cast %10 : vector<1x16x128xbf16> to vector<16x128xbf16>
    %cst_10 = arith.constant dense<0.000000e+00> : vector<128x128xf32>
    %12 = tpu.matmul %9, %11, %cst_10 {dimension_numbers = #tpu.dot_dimension_numbers<[1], [0], [0], [1], [0, 0, 1, 1], [], []>} : vector<128x16xbf16>, vector<16x128xbf16>, vector<128x128xf32> -> vector<128x128xf32>
    %13 = arith.addf %8, %12 : vector<128x128xf32>
    %14 = vector.extract_strided_slice %4 {offsets = [2, 0], sizes = [128, 16], strides = [1, 1]} : vector<136x16xbf16> to vector<128x16xbf16>
    %c2 = arith.constant 2 : index
    %c0_11 = arith.constant 0 : index
    %c0_12 = arith.constant 0 : index
    %15 = vector.load %arg4[%c2, %c0_11, %c0_12] : memref<3x16x128xbf16, #tpu.memory_space<vmem>>, vector<1x16x128xbf16>
    %16 = vector.shape_cast %15 : vector<1x16x128xbf16> to vector<16x128xbf16>
    %cst_13 = arith.constant dense<0.000000e+00> : vector<128x128xf32>
    %17 = tpu.matmul %14, %16, %cst_13 {dimension_numbers = #tpu.dot_dimension_numbers<[1], [0], [0], [1], [0, 0, 1, 1], [], []>} : vector<128x16xbf16>, vector<16x128xbf16>, vector<128x128xf32> -> vector<128x128xf32>
    %18 = arith.addf %13, %17 : vector<128x128xf32>
    %c0_14 = arith.constant 0 : index
    %c0_15 = arith.constant 0 : index
    %19 = vector.load %arg5[%c0_14, %c0_15] : memref<1x128xf32, #tpu.memory_space<vmem>>, vector<1x128xf32>
    %20 = vector.broadcast %19 : vector<1x128xf32> to vector<128x128xf32>
    %21 = arith.addf %18, %20 : vector<128x128xf32>
    %22 = tpu.transpose %21, [1, 0] : vector<128x128xf32> -> vector<128x128xf32>
    %c0_16 = arith.constant 0 : index
    %c0_17 = arith.constant 0 : index
    %c0_18 = arith.constant 0 : index
    %23 = vector.load %arg6[%c0_16, %c0_17, %c0_18] : memref<1x128x128xf32, #tpu.memory_space<vmem>>, vector<1x128x128xf32>
    %24 = vector.shape_cast %23 : vector<1x128x128xf32> to vector<128x128xf32>
    %25 = vector.shape_cast %22 : vector<128x128xf32> to vector<1x128x128xf32>
    tpu.vector_store %arg6[%c0_16, %c0_17, %c0_18], %25 {strides = array<i32>} : memref<1x128x128xf32, #tpu.memory_space<vmem>>, vector<1x128x128xf32>,
    return
  }
  func.func @transform_0(%arg0: i32, %arg1: i32) -> (i32, i32, i32) {
    %c0_i32 = arith.constant 0 : i32
    %c0_i32_0 = arith.constant 0 : i32
    return %arg0, %arg1, %c0_i32 : i32, i32, i32
  }
  func.func @transform_1(%arg0: i32, %arg1: i32) -> (i32, i32, i32) {
    %c1_i32 = arith.constant 1 : i32
    %0 = arith.addi %arg1, %c1_i32 : i32
    %c16_i32 = arith.constant 16 : i32
    %1 = arith.muli %0, %c16_i32 : i32
    %c0_i32 = arith.constant 0 : i32
    %c0_i32_0 = arith.constant 0 : i32
    return %arg0, %1, %c0_i32 : i32, i32, i32
  }
  func.func @transform_2(%arg0: i32, %arg1: i32) -> (i32, i32, i32) {
    %c0_i32 = arith.constant 0 : i32
    %c0_i32_0 = arith.constant 0 : i32
    %c0_i32_1 = arith.constant 0 : i32
    %c0_i32_2 = arith.constant 0 : i32
    return %c0_i32, %c0_i32_0, %c0_i32_1 : i32, i32, i32
  }
  func.func @transform_3(%arg0: i32, %arg1: i32) -> (i32, i32) {
    %c0_i32 = arith.constant 0 : i32
    %c0_i32_0 = arith.constant 0 : i32
    %c0_i32_1 = arith.constant 0 : i32
    return %c0_i32, %c0_i32_0 : i32, i32
  }
  func.func @transform_4(%arg0: i32, %arg1: i32) -> (i32, i32, i32) {
    %c0_i32 = arith.constant 0 : i32
    %c0_i32_0 = arith.constant 0 : i32
    return %arg0, %c0_i32, %arg1 : i32, i32, i32
  }
}

</mosaic_0001>

<llo_original>
// kernel: tpu_custom_call.1
$region0: #{tpu_custom_call.1}
  #allocation0 [shape = 'u32[]', space=smem, size = 0x4, offset = 0x4, fixed_abs, tag = 'smem constant byte address 0x4 - core index']
  #allocation1 [shape = 'u32[144,128]{1,0:T(1,128)}', space=vmem, size = 0x12000, scoped, tag = 'internal scratch']
  %s0 = inlined_call_operand.vmem [shape: bf16[2,256,16], index: 0, kind: input, shape index: {}]
  %s1 = inlined_call_operand.vmem [shape: bf16[2,256,16], index: 1, kind: input, shape index: {}]
  %s2 = inlined_call_operand.vmem [shape: bf16[3,16,128], index: 2, kind: input, shape index: {}]
  %s3 = inlined_call_operand.vmem [shape: f32[1,128], index: 3, kind: input, shape index: {}]
  %s4 = inlined_call_operand.hbm [shape: f32[2,128,128], index: 4, kind: output, shape index: {}]
  %s5 = sld [smem:[#allocation0]]
  $region49: #{tpu_custom_call.1} parent=0
    _
  %s7 = ssub.s32 1, %s5
  %s8 = scalar_select 0, %s7, %s5
  $region1: #{tpu_custom_call.1} parent=0
    #allocation2 [shape = 'u8[131072]{0}', space=vmem, size = 0x20000, scoped, tag = 'output window, operand 0']
    #allocation3 [shape = 's32[2]{0}', space=sflag, size = 0x8, scoped, tag = 'scoped memory for tpu_custom_call.1']
    %9 = vsyncpa [#allocation3], 0
    %s10 = scalar_lea.sflag [#allocation3], 1
    %11 = vsyncpa %s10, 0
    loop: start=0, step=1, limit=4
    $region2: #{tpu_custom_call.1} parent=1 // loop_pre_header
      _
    $region3: #{tpu_custom_call.1} parent=1 // loop_header
      %s13 = sphi 0, %s17
      %p14 = scmp.ge.s32.totalorder %s13, 4
      %s20 = sphi 0, %s32
      %s21 = sphi 0, %s28
      %s22 = sphi 0, %s20
      %s23 = sphi 0, %s21
      %s24 = sphi 0, %s22
      %s25 = sphi 0, %s23
      %s37 = sphi 0, %s39
      %s40 = sphi 0, %s37
      %s41 = sphi 0, %s40
      %s57 = sphi 0, %s41
      %s69 = sphi 0, %s71
      %s72 = sphi 0, %s69
      %s73 = sphi 0, %s72
      %s89 = sphi 0, %s73
      %s93 = sphi 0, %s93
      %s95 = sphi 0, %s93
      %s96 = sphi 0, %s95
      %s110 = sphi 0, %s96
      %s114 = sphi 0, %s114
      %s116 = sphi 0, %s114
      %s117 = sphi 0, %s116
      %s131 = sphi 0, %s117
      %s139 = sphi 0, %s141
      %s142 = sphi 0, %s139
      %s143 = sphi 0, %s142
      %s159 = sphi 0, %s143
    $region4: #{tpu_custom_call.1} parent=1 // loop_header_branch
      %16 = sbr.rel (%p14) target = $region8
    $region5: #{tpu_custom_call.1} parent=1 // loop_body
      %s18 = ssub.s32 %s13, 1
      %s19 = ssub.s32 %s13, 2
      %s26 = sadd.s32 1, %s21
      %p27 = scmp.ge.s32.totalorder %s26, 1
      %s28 = scalar_select %p27, 0, %s26
      %s29 = sadd.s32 1, %s20
      %s30 = scalar_select %p27, %s29, %s20
      %p31 = scmp.ge.s32.totalorder %s30, 2
      %s32 = scalar_select %p31, 0, %s30
      %s33 = ssub.s32 %s20, %s32
      %s34 = ssub.s32 %s21, %s28
      %s35 = sor.u32 %s33, %s34
      %p36 = scmp.eq.s32.totalorder %s35, 0
      %s38 = sadd.s32 %s37, 1
      %s39 = scalar_select %p36, %s37, %s38
      %p42 = pneg %p36
      %p43 = scmp.eq.s32.totalorder %s13, 1
      %p44 = por %p42, %p43
      %p45 = scmp.ne.s32.totalorder %s37, %s40
      %p46 = scmp.eq.s32.totalorder %s13, 0
      %p47 = por %p45, %p46
      %p48 = scmp.ne.s32.totalorder %s37, %s40
      %p49 = scmp.eq.s32.totalorder %s18, 1
      %p50 = por %p48, %p49
      %p51 = scmp.ne.s32.totalorder %s40, %s41
      %p52 = scmp.eq.s32.totalorder %s18, 0
      %p53 = por %p51, %p52
      %p54 = scmp.ne.s32.totalorder %s40, %s41
      %p55 = scmp.eq.s32.totalorder %s19, 1
      %p56 = por %p54, %p55
      %p58 = scmp.ne.s32.totalorder %s41, %s57
      %p59 = scmp.eq.s32.totalorder %s19, 0
      %p60 = por %p58, %p59
      %s61 = sadd.s32 %s21, 1
      %s62 = smul.u32 %s61, 16
      %s63 = sadd.s32 %s28, 1
      %s64 = smul.u32 %s63, 16
      %s65 = ssub.s32 %s20, %s32
      %s66 = ssub.s32 %s62, %s64
      %s67 = sor.u32 %s65, %s66
      %p68 = scmp.eq.s32.totalorder %s67, 0
      %s70 = sadd.s32 %s69, 1
      %s71 = scalar_select %p68, %s69, %s70
      %p74 = pneg %p68
      %p75 = scmp.eq.s32.totalorder %s13, 1
      %p76 = por %p74, %p75
      %p77 = scmp.ne.s32.totalorder %s69, %s72
      %p78 = scmp.eq.s32.totalorder %s13, 0
      %p79 = por %p77, %p78
      %p80 = scmp.ne.s32.totalorder %s69, %s72
      %p81 = scmp.eq.s32.totalorder %s18, 1
      %p82 = por %p80, %p81
      %p83 = scmp.ne.s32.totalorder %s72, %s73
      %p84 = scmp.eq.s32.totalorder %s18, 0
      %p85 = por %p83, %p84
      %p86 = scmp.ne.s32.totalorder %s72, %s73
      %p87 = scmp.eq.s32.totalorder %s19, 1
      %p88 = por %p86, %p87
      %p90 = scmp.ne.s32.totalorder %s73, %s89
      %p91 = scmp.eq.s32.totalorder %s19, 0
      %p92 = por %p90, %p91
      %s94 = sadd.s32 %s93, 1
      %p97 = scmp.eq.s32.totalorder %s13, 1
      %p98 = scmp.ne.s32.totalorder %s93, %s95
      %p99 = scmp.eq.s32.totalorder %s13, 0
      %p100 = por %p98, %p99
      %p101 = scmp.ne.s32.totalorder %s93, %s95
      %p102 = scmp.eq.s32.totalorder %s18, 1
      %p103 = por %p101, %p102
      %p104 = scmp.ne.s32.totalorder %s95, %s96
      %p105 = scmp.eq.s32.totalorder %s18, 0
      %p106 = por %p104, %p105
      %p107 = scmp.ne.s32.totalorder %s95, %s96
      %p108 = scmp.eq.s32.totalorder %s19, 1
      %p109 = por %p107, %p108
      %p111 = scmp.ne.s32.totalorder %s96, %s110
      %p112 = scmp.eq.s32.totalorder %s19, 0
      %p113 = por %p111, %p112
      %s115 = sadd.s32 %s114, 1
      %p118 = scmp.eq.s32.totalorder %s13, 1
      %p119 = scmp.ne.s32.totalorder %s114, %s116
      %p120 = scmp.eq.s32.totalorder %s13, 0
      %p121 = por %p119, %p120
      %p122 = scmp.ne.s32.totalorder %s114, %s116
      %p123 = scmp.eq.s32.totalorder %s18, 1
      %p124 = por %p122, %p123
      %p125 = scmp.ne.s32.totalorder %s116, %s117
      %p126 = scmp.eq.s32.totalorder %s18, 0
      %p127 = por %p125, %p126
      %p128 = scmp.ne.s32.totalorder %s116, %s117
      %p129 = scmp.eq.s32.totalorder %s19, 1
      %p130 = por %p128, %p129
      %p132 = scmp.ne.s32.totalorder %s117, %s131
      %p133 = scmp.eq.s32.totalorder %s19, 0
      %p134 = por %p132, %p133
      %s135 = ssub.s32 %s20, %s32
      %s136 = ssub.s32 %s21, %s28
      %s137 = sor.u32 %s135, %s136
      %p138 = scmp.eq.s32.totalorder %s137, 0
      %s140 = sadd.s32 %s139, 1
      %s141 = scalar_select %p138, %s139, %s140
      %p144 = pneg %p138
      %p145 = scmp.eq.s32.totalorder %s13, 1
      %p146 = por %p144, %p145
      %p147 = scmp.ne.s32.totalorder %s139, %s142
      %p148 = scmp.eq.s32.totalorder %s13, 0
      %p149 = por %p147, %p148
      %p150 = scmp.ne.s32.totalorder %s139, %s142
      %p151 = scmp.eq.s32.totalorder %s18, 1
      %p152 = por %p150, %p151
      %p153 = scmp.ne.s32.totalorder %s142, %s143
      %p154 = scmp.eq.s32.totalorder %s18, 0
      %p155 = por %p153, %p154
      %p156 = scmp.ne.s32.totalorder %s142, %s143
      %p157 = scmp.eq.s32.totalorder %s19, 1
      %p158 = por %p156, %p157
      %p160 = scmp.ne.s32.totalorder %s143, %s159
      %p161 = scmp.eq.s32.totalorder %s19, 0
      %p162 = por %p160, %p161
      %p163 = scmp.le.s32.totalorder 1, %s13
      %p164 = scmp.lt.s32.totalorder %s13, 3
      %p165 = pnand %p163, %p164
      %p166 = pneg %p165
      // Predicated region
      $region9: #{tpu_custom_call.1} parent=5 // pred_check
        _
      $region10: #{tpu_custom_call.1} parent=5 // pred_check_branch
        %168 = sbr.rel (%p165) target = $region12
      $region11: #{tpu_custom_call.1} parent=5 // pred_region
        %s169 = ssub.s32 %s13, 1
        // Predicated region
        $region13: #{tpu_custom_call.1} parent=11 // pred_check
          %p170 = pneg %p106
        $region14: #{tpu_custom_call.1} parent=11 // pred_check_branch
          %172 = sbr.rel (%p170) target = $region16
        $region15: #{tpu_custom_call.1} parent=11 // pred_region
          _
        $region16: #{tpu_custom_call.1} parent=11 // pred_fallthru
          _
        // Predicated region
        $region17: #{tpu_custom_call.1} parent=11 // pred_check
          %p173 = pneg %p127
        $region18: #{tpu_custom_call.1} parent=11 // pred_check_branch
          %175 = sbr.rel (%p173) target = $region20
        $region19: #{tpu_custom_call.1} parent=11 // pred_region
          _
        $region20: #{tpu_custom_call.1} parent=11 // pred_fallthru
          _
      $region12: #{tpu_custom_call.1} parent=5 // pred_fallthru
        _
      %p176 = scmp.lt.s32.totalorder %s13, 2
      // Predicated region
      $region21: #{tpu_custom_call.1} parent=5 // pred_check
        %p177 = pneg %p176
      $region22: #{tpu_custom_call.1} parent=5 // pred_check_branch
        %179 = sbr.rel (%p177) target = $region24
      $region23: #{tpu_custom_call.1} parent=5 // pred_region
        // Predicated region
        $region25: #{tpu_custom_call.1} parent=23 // pred_check
          %p180 = pneg %p47
        $region26: #{tpu_custom_call.1} parent=23 // pred_check_branch
          %182 = sbr.rel (%p180) target = $region28
        $region27: #{tpu_custom_call.1} parent=23 // pred_region
          %s183 = smul.u32 16, %s21
          %p184 = scmp.lt.s32.totalorder %s20, 1
          %s185 = scalar_select %p184, %s20, 1
          %p186 = scmp.lt.s32.totalorder %s183, 31
          %s187 = scalar_select %p186, %s183, 31
          %s188 = smul.addr %s185, 32
          %s189 = sadd.s32 %s187, %s188
          %s190 = smul.addr %s189, 4
          %s191 = scalar_lea.vmem %s0, %s190
          %s192 = smul.u32 16, %s21
        $region28: #{tpu_custom_call.1} parent=23 // pred_fallthru
          _
        // Predicated region
        $region29: #{tpu_custom_call.1} parent=23 // pred_check
          %p193 = pneg %p79
        $region30: #{tpu_custom_call.1} parent=23 // pred_check_branch
          %195 = sbr.rel (%p193) target = $region32
        $region31: #{tpu_custom_call.1} parent=23 // pred_region
          %s196 = sadd.s32 %s21, 1
          %s197 = smul.u32 %s196, 16
          %p198 = scmp.lt.s32.totalorder %s20, 1
          %s199 = scalar_select %p198, %s20, 1
          %p200 = scmp.lt.s32.totalorder %s197, 31
          %s201 = scalar_select %p200, %s197, 31
          %s202 = smul.addr %s199, 32
          %s203 = sadd.s32 %s201, %s202
          %s204 = smul.addr %s203, 4
          %s205 = scalar_lea.vmem %s1, %s204
          %s206 = sadd.s32 %s21, 1
          %s207 = smul.u32 %s206, 16
        $region32: #{tpu_custom_call.1} parent=23 // pred_fallthru
          _
      $region24: #{tpu_custom_call.1} parent=5 // pred_fallthru
        _
      %p208 = scmp.le.s32.totalorder 1, %s13
      %p209 = scmp.lt.s32.totalorder %s13, 3
      %p210 = pnand %p208, %p209
      %p211 = pneg %p210
      // Predicated region
      $region33: #{tpu_custom_call.1} parent=5 // pred_check
        _
      $region34: #{tpu_custom_call.1} parent=5 // pred_check_branch
        %213 = sbr.rel (%p210) target = $region36
      $region35: #{tpu_custom_call.1} parent=5 // pred_region
        %s214 = ssub.s32 %s13, 1
        %s215 = smul.u32 16, %s23
        %p216 = scmp.lt.s32.totalorder %s22, 1
        %s217 = scalar_select %p216, %s22, 1
        %p218 = scmp.lt.s32.totalorder %s215, 31
        %s219 = scalar_select %p218, %s215, 31
        %s220 = smul.addr %s217, 32
        %s221 = sadd.s32 %s219, %s220
        %s222 = smul.addr %s221, 4
        %s223 = scalar_lea.vmem %s0, %s222
        %p224 = pneg %p53
        %p225 = pneg %p50
        %s226 = sadd.s32 %s23, 1
        %s227 = smul.u32 %s226, 16
        %p228 = scmp.lt.s32.totalorder %s22, 1
        %s229 = scalar_select %p228, %s22, 1
        %p230 = scmp.lt.s32.totalorder %s227, 31
        %s231 = scalar_select %p230, %s227, 31
        %s232 = smul.addr %s229, 32
        %s233 = sadd.s32 %s231, %s232
        %s234 = smul.addr %s233, 4
        %s235 = scalar_lea.vmem %s1, %s234
        %p236 = pneg %p85
        %p237 = pneg %p82
        %p238 = pneg %p106
        %p239 = pneg %p103
        %p240 = pneg %p127
        %p241 = pneg %p124
        %p242 = pneg %p155
        %p243 = pneg %p152
        %s244 = sand.u32 %s142, 1
        %s245 = scalar_lea.sflag [#allocation3], %s244
        %s246 = sand.u32 %s142, 1
        %s247 = smul.addr %s246, 128
        %s248 = scalar_lea.vmem [#allocation2], %s247
        %s249 = smul.u32 16, %s23
        %p250 = scmp.lt.s32.totalorder %s22, 1
        %s251 = scalar_select %p250, %s22, 1
        %p252 = scmp.lt.s32.totalorder %s249, 31
        %s253 = scalar_select %p252, %s249, 31
        %s254 = smul.addr %s251, 32
        %s255 = sadd.s32 %s253, %s254
        %s256 = smul.addr %s255, 4
        %s257 = scalar_lea.vmem %s0, %s256
        %s258 = smul.u32 16, %s23
        %s259 = sadd.s32 %s23, 1
        %s260 = smul.u32 %s259, 16
        %p261 = scmp.lt.s32.totalorder %s22, 1
        %s262 = scalar_select %p261, %s22, 1
        %p263 = scmp.lt.s32.totalorder %s260, 31
        %s264 = scalar_select %p263, %s260, 31
        %s265 = smul.addr %s262, 32
        %s266 = sadd.s32 %s264, %s265
        %s267 = smul.addr %s266, 4
        %s268 = scalar_lea.vmem %s1, %s267
        %s269 = sadd.s32 %s23, 1
        %s270 = smul.u32 %s269, 16
        %v272 = vld [vmem:[%s257] sm:$0xf]
        %v273 = vld [vmem:[%s257 + $0x4] sm:$0xf]
        %v274 = vld [vmem:[%s257 + $0x8] sm:$0xf]
        %v275 = vld [vmem:[%s257 + $0xc] sm:$0xf]
        %v276 = vld [vmem:[%s257 + $0x10] sm:$0xf]
        %v277 = vld [vmem:[%s257 + $0x14] sm:$0xf]
        %v278 = vld [vmem:[%s257 + $0x18] sm:$0xf]
        %v279 = vld [vmem:[%s257 + $0x1c] sm:$0xf]
        %v280 = vld [vmem:[%s257 + $0x20] sm:$0xf]
        %v281 = vld [vmem:[%s257 + $0x24] sm:$0xf]
        %v282 = vld [vmem:[%s257 + $0x28] sm:$0xf]
        %v283 = vld [vmem:[%s257 + $0x2c] sm:$0xf]
        %v284 = vld [vmem:[%s257 + $0x30] sm:$0xf]
        %v285 = vld [vmem:[%s257 + $0x34] sm:$0xf]
        %v286 = vld [vmem:[%s257 + $0x38] sm:$0xf]
        %v287 = vld [vmem:[%s257 + $0x3c] sm:$0xf]
        %v288 = vld [vmem:[%s268] sm:$0xf]
        %v305 = vunpack.c.l.b16 %v272
        %v306 = vunpack.c.l.b16 %v273
        %v307 = vunpack.c.l.b16 %v274
        %v308 = vunpack.c.l.b16 %v275
        %v309 = vunpack.c.l.b16 %v276
        %v310 = vunpack.c.l.b16 %v277
        %v311 = vunpack.c.l.b16 %v278
        %v312 = vunpack.c.l.b16 %v279
        %v313 = vunpack.c.l.b16 %v280
        %v314 = vunpack.c.l.b16 %v281
        %v315 = vunpack.c.l.b16 %v282
        %v316 = vunpack.c.l.b16 %v283
        %v317 = vunpack.c.l.b16 %v284
        %v318 = vunpack.c.l.b16 %v285
        %v319 = vunpack.c.l.b16 %v286
        %v320 = vunpack.c.l.b16 %v287
        %v321 = vpack.c.b16 %v306, %v305
        %v322 = vpack.c.b16 %v308, %v307
        %v323 = vpack.c.b16 %v310, %v309
        %v324 = vpack.c.b16 %v312, %v311
        %v325 = vpack.c.b16 %v314, %v313
        %v326 = vpack.c.b16 %v316, %v315
        %v327 = vpack.c.b16 %v318, %v317
        %v328 = vpack.c.b16 %v320, %v319
        %v329 = vld [vmem:[%s2] sm:$0xf]
        %v330 = vld [vmem:[%s2 + $0x4] sm:$0xf]
        %s331 = scalar_lea.vmem %s2, 8
        %v332 = vld [vmem:[%s331] sm:$0xf]
        %v333 = vld [vmem:[%s331 + $0x4] sm:$0xf]
        %vm334 = vsmask.f32 7424
        %v336 = vshrl.u32 %v321, 16
        %v338 = vshll.u32 %v321, 16
        %v340 = vrot.slane %v338, 1
        %v341 = vor.u32 %v336, %v340
        %v343 = vshll.u32 %v322, 16
        %v345 = vrot.slane %v343, 1
        %v346 = vsel %vm334, %v341, %v345
        %v347 = vshrl.u32 %v322, 16
        %v349 = vor.u32 %v347, %v345
        %v351 = vshll.u32 %v323, 16
        %v353 = vrot.slane %v351, 1
        %v354 = vsel %vm334, %v349, %v353
        %v355 = vshrl.u32 %v323, 16
        %v357 = vor.u32 %v355, %v353
        %v359 = vshll.u32 %v324, 16
        %v361 = vrot.slane %v359, 1
        %v362 = vsel %vm334, %v357, %v361
        %v363 = vshrl.u32 %v324, 16
        %v365 = vor.u32 %v363, %v361
        %v367 = vshll.u32 %v325, 16
        %v369 = vrot.slane %v367, 1
        %v370 = vsel %vm334, %v365, %v369
        %v371 = vshrl.u32 %v325, 16
        %v373 = vor.u32 %v371, %v369
        %v375 = vshll.u32 %v326, 16
        %v377 = vrot.slane %v375, 1
        %v378 = vsel %vm334, %v373, %v377
        %v379 = vshrl.u32 %v326, 16
        %v381 = vor.u32 %v379, %v377
        %v383 = vshll.u32 %v327, 16
        %v385 = vrot.slane %v383, 1
        %v386 = vsel %vm334, %v381, %v385
        %v387 = vshrl.u32 %v327, 16
        %v389 = vor.u32 %v387, %v385
        %v391 = vshll.u32 %v328, 16
        %v393 = vrot.slane %v391, 1
        %v394 = vsel %vm334, %v389, %v393
        %v395 = vshrl.u32 %v328, 16
        %v397 = vor.u32 %v395, %v393
        %v399 = vshll.u32 %v288, 16
        %v401 = vrot.slane %v399, 1
        %v402 = vsel %vm334, %v397, %v401
        %v405 = vunpack.c.l.b16 %v332
        %v406 = vunpack.c.l.b16 %v333
        %v407 = vpack.c.b16 %v406, %v405
        %vm409 = vcmask 130048
        %v411 = vsel %vm409, %v346, 0
        %v414 = vsel %vm409, %v354, 0
        %v417 = vsel %vm409, %v362, 0
        %v420 = vsel %vm409, %v370, 0
        %v423 = vsel %vm409, %v378, 0
        %v426 = vsel %vm409, %v386, 0
        %v429 = vsel %vm409, %v394, 0
        %v432 = vsel %vm409, %v402, 0
        %434 = vmatprep.subr.bf16.mxu0 0
        %435 = vmatpush1.bf16.msra.mxu0 %v407
        %436 = vmatprep.subr.bf16.mxu0 0
        %437 = vmatpush1.bf16.msra.mxu0 0
        %438 = vmatprep.subr.bf16.mxu0 0
        %439 = vmatpush1.bf16.msra.mxu0 0
        %440 = vmatprep.subr.bf16.mxu0 0
        %441 = vmatpush1.bf16.msra.mxu0 0
        %442 = vmatprep.subr.bf16.mxu0 0
        %443 = vmatpush1.bf16.msra.mxu0 0
        %444 = vmatprep.subr.bf16.mxu0 0
        %445 = vmatpush1.bf16.msra.mxu0 0
        %446 = vmatprep.subr.bf16.mxu0 0
        %447 = vmatpush1.bf16.msra.mxu0 0
        %448 = vmatprep.subr.bf16.mxu0 0
        %449 = vmatpush1.bf16.msra.mxu0 0
        %450 = vmatprep.subr.bf16.mxu0 0
        %451 = vmatpush1.bf16.msra.mxu0 0
        %452 = vmatprep.subr.bf16.mxu0 0
        %453 = vmatpush1.bf16.msra.mxu0 0
        %454 = vmatprep.subr.bf16.mxu0 0
        %455 = vmatpush1.bf16.msra.mxu0 0
        %456 = vmatprep.subr.bf16.mxu0 0
        %457 = vmatpush1.bf16.msra.mxu0 0
        %458 = vmatprep.subr.bf16.mxu0 0
        %459 = vmatpush1.bf16.msra.mxu0 0
        %460 = vmatprep.subr.bf16.mxu0 0
        %461 = vmatpush1.bf16.msra.mxu0 0
        %462 = vmatprep.subr.bf16.mxu0 0
        %463 = vmatpush1.bf16.msra.mxu0 0
        %464 = vmatprep.subr.bf16.mxu0 0
        %465 = vmatpush1.bf16.msra.mxu0 0
        %466 = vmatprep.mubr.bf16.mxu0 0
        %467 = vmatmul.mubr.bf16.gmra.mrb[0].mxu0 %v411
        %v468 = vpop.f32.mrb[0].mxu0
        %v469 = vadd.f32 0.0, %v468
        %v470 = vpop.f32.mrb[0].mxu0
        %v471 = vpop.f32.mrb[0].mxu0
        %v472 = vadd.f32 0.0, %v471
        %v473 = vpop.f32.mrb[0].mxu0
        %474 = vmatprep.mubr.bf16.mxu0 0
        %475 = vmatmul.mubr.bf16.gmra.mrb[0].mxu0 %v414
        %v476 = vpop.f32.mrb[0].mxu0
        %v477 = vadd.f32 0.0, %v476
        %v478 = vpop.f32.mrb[0].mxu0
        %v479 = vpop.f32.mrb[0].mxu0
        %v480 = vadd.f32 0.0, %v479
        %v481 = vpop.f32.mrb[0].mxu0
        %482 = vmatprep.mubr.bf16.mxu0 0
        %483 = vmatmul.mubr.bf16.gmra.mrb[0].mxu0 %v417
        %v484 = vpop.f32.mrb[0].mxu0
        %v485 = vadd.f32 0.0, %v484
        %v486 = vpop.f32.mrb[0].mxu0
        %v487 = vpop.f32.mrb[0].mxu0
        %v488 = vadd.f32 0.0, %v487
        %v489 = vpop.f32.mrb[0].mxu0
        %490 = vmatprep.mubr.bf16.mxu0 0
        %491 = vmatmul.mubr.bf16.gmra.mrb[0].mxu0 %v420
        %v492 = vpop.f32.mrb[0].mxu0
        %v493 = vadd.f32 0.0, %v492
        %v494 = vpop.f32.mrb[0].mxu0
        %v495 = vpop.f32.mrb[0].mxu0
        %v496 = vadd.f32 0.0, %v495
        %v497 = vpop.f32.mrb[0].mxu0
        %498 = vmatprep.mubr.bf16.mxu0 0
        %499 = vmatmul.mubr.bf16.gmra.mrb[0].mxu0 %v423
        %v500 = vpop.f32.mrb[0].mxu0
        %v501 = vadd.f32 0.0, %v500
        %v502 = vpop.f32.mrb[0].mxu0
        %v503 = vpop.f32.mrb[0].mxu0
        %v504 = vadd.f32 0.0, %v503
        %v505 = vpop.f32.mrb[0].mxu0
        %506 = vmatprep.mubr.bf16.mxu0 0
        %507 = vmatmul.mubr.bf16.gmra.mrb[0].mxu0 %v426
        %v508 = vpop.f32.mrb[0].mxu0
        %v509 = vadd.f32 0.0, %v508
        %v510 = vpop.f32.mrb[0].mxu0
        %v511 = vpop.f32.mrb[0].mxu0
        %v512 = vadd.f32 0.0, %v511
        %v513 = vpop.f32.mrb[0].mxu0
        %514 = vmatprep.mubr.bf16.mxu0 0
        %515 = vmatmul.mubr.bf16.gmra.mrb[0].mxu0 %v429
        %v516 = vpop.f32.mrb[0].mxu0
        %v517 = vadd.f32 0.0, %v516
        %v518 = vpop.f32.mrb[0].mxu0
        %v519 = vpop.f32.mrb[0].mxu0
        %v520 = vadd.f32 0.0, %v519
        %v521 = vpop.f32.mrb[0].mxu0
        %522 = vmatprep.mubr.bf16.mxu0 0
        %523 = vmatmul.mubr.bf16.gmra.mrb[0].mxu0 %v432
        %v524 = vpop.f32.mrb[0].mxu0
        %v525 = vadd.f32 0.0, %v524
        %v526 = vpop.f32.mrb[0].mxu0
        %v527 = vpop.f32.mrb[0].mxu0
        %v528 = vadd.f32 0.0, %v527
        %v529 = vpop.f32.mrb[0].mxu0
        %530 = vdwg.mxu0
        %v533 = vunpack.c.l.b16 %v329
        %v534 = vunpack.c.l.b16 %v330
        %v535 = vpack.c.b16 %v534, %v533
        %v537 = vsel %vm409, %v321, 0
        %v539 = vsel %vm409, %v322, 0
        %v541 = vsel %vm409, %v323, 0
        %v543 = vsel %vm409, %v324, 0
        %v545 = vsel %vm409, %v325, 0
        %v547 = vsel %vm409, %v326, 0
        %v549 = vsel %vm409, %v327, 0
        %v551 = vsel %vm409, %v328, 0
        %553 = vmatprep.subr.bf16.mxu0 0
        %554 = vmatpush1.bf16.msra.mxu0 %v535
        %555 = vmatprep.subr.bf16.mxu0 0
        %556 = vmatpush1.bf16.msra.mxu0 0
        %557 = vmatprep.subr.bf16.mxu0 0
        %558 = vmatpush1.bf16.msra.mxu0 0
        %559 = vmatprep.subr.bf16.mxu0 0
        %560 = vmatpush1.bf16.msra.mxu0 0
        %561 = vmatprep.subr.bf16.mxu0 0
        %562 = vmatpush1.bf16.msra.mxu0 0
        %563 = vmatprep.subr.bf16.mxu0 0
        %564 = vmatpush1.bf16.msra.mxu0 0
        %565 = vmatprep.subr.bf16.mxu0 0
        %566 = vmatpush1.bf16.msra.mxu0 0
        %567 = vmatprep.subr.bf16.mxu0 0
        %568 = vmatpush1.bf16.msra.mxu0 0
        %569 = vmatprep.subr.bf16.mxu0 0
        %570 = vmatpush1.bf16.msra.mxu0 0
        %571 = vmatprep.subr.bf16.mxu0 0
        %572 = vmatpush1.bf16.msra.mxu0 0
        %573 = vmatprep.subr.bf16.mxu0 0
        %574 = vmatpush1.bf16.msra.mxu0 0
        %575 = vmatprep.subr.bf16.mxu0 0
        %576 = vmatpush1.bf16.msra.mxu0 0
        %577 = vmatprep.subr.bf16.mxu0 0
        %578 = vmatpush1.bf16.msra.mxu0 0
        %579 = vmatprep.subr.bf16.mxu0 0
        %580 = vmatpush1.bf16.msra.mxu0 0
        %581 = vmatprep.subr.bf16.mxu0 0
        %582 = vmatpush1.bf16.msra.mxu0 0
        %583 = vmatprep.subr.bf16.mxu0 0
        %584 = vmatpush1.bf16.msra.mxu0 0
        %585 = vmatprep.mubr.bf16.mxu0 0
        %586 = vmatmul.mubr.bf16.gmra.mrb[0].mxu0 %v537
        %v587 = vpop.f32.mrb[0].mxu0
        %v588 = vadd.f32 %v469, %v587
        %v589 = vpop.f32.mrb[0].mxu0
        %v590 = vpop.f32.mrb[0].mxu0
        %v591 = vadd.f32 %v472, %v590
        %v592 = vpop.f32.mrb[0].mxu0
        %593 = vmatprep.mubr.bf16.mxu0 0
        %594 = vmatmul.mubr.bf16.gmra.mrb[0].mxu0 %v539
        %v595 = vpop.f32.mrb[0].mxu0
        %v596 = vadd.f32 %v477, %v595
        %v597 = vpop.f32.mrb[0].mxu0
        %v598 = vpop.f32.mrb[0].mxu0
        %v599 = vadd.f32 %v480, %v598
        %v600 = vpop.f32.mrb[0].mxu0
        %601 = vmatprep.mubr.bf16.mxu0 0
        %602 = vmatmul.mubr.bf16.gmra.mrb[0].mxu0 %v541
        %v603 = vpop.f32.mrb[0].mxu0
        %v604 = vadd.f32 %v485, %v603
        %v605 = vpop.f32.mrb[0].mxu0
        %v606 = vpop.f32.mrb[0].mxu0
        %v607 = vadd.f32 %v488, %v606
        %v608 = vpop.f32.mrb[0].mxu0
        %609 = vmatprep.mubr.bf16.mxu0 0
        %610 = vmatmul.mubr.bf16.gmra.mrb[0].mxu0 %v543
        %v611 = vpop.f32.mrb[0].mxu0
        %v612 = vadd.f32 %v493, %v611
        %v613 = vpop.f32.mrb[0].mxu0
        %v614 = vpop.f32.mrb[0].mxu0
        %v615 = vadd.f32 %v496, %v614
        %v616 = vpop.f32.mrb[0].mxu0
        %617 = vmatprep.mubr.bf16.mxu0 0
        %618 = vmatmul.mubr.bf16.gmra.mrb[0].mxu0 %v545
        %v619 = vpop.f32.mrb[0].mxu0
        %v620 = vadd.f32 %v501, %v619
        %v621 = vpop.f32.mrb[0].mxu0
        %v622 = vpop.f32.mrb[0].mxu0
        %v623 = vadd.f32 %v504, %v622
        %v624 = vpop.f32.mrb[0].mxu0
        %625 = vmatprep.mubr.bf16.mxu0 0
        %626 = vmatmul.mubr.bf16.gmra.mrb[0].mxu0 %v547
        %v627 = vpop.f32.mrb[0].mxu0
        %v628 = vadd.f32 %v509, %v627
        %v629 = vpop.f32.mrb[0].mxu0
        %v630 = vpop.f32.mrb[0].mxu0
        %v631 = vadd.f32 %v512, %v630
        %v632 = vpop.f32.mrb[0].mxu0
        %633 = vmatprep.mubr.bf16.mxu0 0
        %634 = vmatmul.mubr.bf16.gmra.mrb[0].mxu0 %v549
        %v635 = vpop.f32.mrb[0].mxu0
        %v636 = vadd.f32 %v517, %v635
        %v637 = vpop.f32.mrb[0].mxu0
        %v638 = vpop.f32.mrb[0].mxu0
        %v639 = vadd.f32 %v520, %v638
        %v640 = vpop.f32.mrb[0].mxu0
        %641 = vmatprep.mubr.bf16.mxu0 0
        %642 = vmatmul.mubr.bf16.gmra.mrb[0].mxu0 %v551
        %v643 = vpop.f32.mrb[0].mxu0
        %v644 = vadd.f32 %v525, %v643
        %v645 = vpop.f32.mrb[0].mxu0
        %v646 = vpop.f32.mrb[0].mxu0
        %v647 = vadd.f32 %v528, %v646
        %v648 = vpop.f32.mrb[0].mxu0
        %649 = vdwg.mxu0
        %s650 = scalar_lea.vmem %s2, 16
        %v651 = vld [vmem:[%s650] sm:$0xf]
        %v652 = vld [vmem:[%s650 + $0x4] sm:$0xf]
        %vm654 = vcmask 1046528
        %v655 = vrot.slane %v321, 1
        %v656 = vrot.slane %v322, 1
        %v657 = vsel %vm654, %v655, %v656
        %v658 = vrot.slane %v323, 1
        %v659 = vsel %vm654, %v656, %v658
        %v660 = vrot.slane %v324, 1
        %v661 = vsel %vm654, %v658, %v660
        %v662 = vrot.slane %v325, 1
        %v663 = vsel %vm654, %v660, %v662
        %v664 = vrot.slane %v326, 1
        %v665 = vsel %vm654, %v662, %v664
        %v666 = vrot.slane %v327, 1
        %v667 = vsel %vm654, %v664, %v666
        %v668 = vrot.slane %v328, 1
        %v669 = vsel %vm654, %v666, %v668
        %v670 = vrot.slane %v288, 1
        %v671 = vsel %vm654, %v668, %v670
        %v674 = vunpack.c.l.b16 %v651
        %v675 = vunpack.c.l.b16 %v652
        %v676 = vpack.c.b16 %v675, %v674
        %v679 = vsel %vm409, %v657, 0
        %v682 = vsel %vm409, %v659, 0
        %v685 = vsel %vm409, %v661, 0
        %v688 = vsel %vm409, %v663, 0
        %v691 = vsel %vm409, %v665, 0
        %v694 = vsel %vm409, %v667, 0
        %v697 = vsel %vm409, %v669, 0
        %v700 = vsel %vm409, %v671, 0
        %702 = vmatprep.subr.bf16.mxu0 0
        %703 = vmatpush1.bf16.msra.mxu0 %v676
        %704 = vmatprep.subr.bf16.mxu0 0
        %705 = vmatpush1.bf16.msra.mxu0 0
        %706 = vmatprep.subr.bf16.mxu0 0
        %707 = vmatpush1.bf16.msra.mxu0 0
        %708 = vmatprep.subr.bf16.mxu0 0
        %709 = vmatpush1.bf16.msra.mxu0 0
        %710 = vmatprep.subr.bf16.mxu0 0
        %711 = vmatpush1.bf16.msra.mxu0 0
        %712 = vmatprep.subr.bf16.mxu0 0
        %713 = vmatpush1.bf16.msra.mxu0 0
        %714 = vmatprep.subr.bf16.mxu0 0
        %715 = vmatpush1.bf16.msra.mxu0 0
        %716 = vmatprep.subr.bf16.mxu0 0
        %717 = vmatpush1.bf16.msra.mxu0 0
        %718 = vmatprep.subr.bf16.mxu0 0
        %719 = vmatpush1.bf16.msra.mxu0 0
        %720 = vmatprep.subr.bf16.mxu0 0
        %721 = vmatpush1.bf16.msra.mxu0 0
        %722 = vmatprep.subr.bf16.mxu0 0
        %723 = vmatpush1.bf16.msra.mxu0 0
        %724 = vmatprep.subr.bf16.mxu0 0
        %725 = vmatpush1.bf16.msra.mxu0 0
        %726 = vmatprep.subr.bf16.mxu0 0
        %727 = vmatpush1.bf16.msra.mxu0 0
        %728 = vmatprep.subr.bf16.mxu0 0
        %729 = vmatpush1.bf16.msra.mxu0 0
        %730 = vmatprep.subr.bf16.mxu0 0
        %731 = vmatpush1.bf16.msra.mxu0 0
        %732 = vmatprep.subr.bf16.mxu0 0
        %733 = vmatpush1.bf16.msra.mxu0 0
        %734 = vmatprep.mubr.bf16.mxu0 0
        %735 = vmatmul.mubr.bf16.gmra.mrb[0].mxu0 %v679
        %v736 = vpop.f32.mrb[0].mxu0
        %v737 = vadd.f32 0.0, %v736
        %v738 = vpop.f32.mrb[0].mxu0
        %v739 = vpop.f32.mrb[0].mxu0
        %v740 = vadd.f32 0.0, %v739
        %v741 = vpop.f32.mrb[0].mxu0
        %742 = vmatprep.mubr.bf16.mxu0 0
        %743 = vmatmul.mubr.bf16.gmra.mrb[0].mxu0 %v682
        %v744 = vpop.f32.mrb[0].mxu0
        %v745 = vadd.f32 0.0, %v744
        %v746 = vpop.f32.mrb[0].mxu0
        %v747 = vpop.f32.mrb[0].mxu0
        %v748 = vadd.f32 0.0, %v747
        %v749 = vpop.f32.mrb[0].mxu0
        %750 = vmatprep.mubr.bf16.mxu0 0
        %751 = vmatmul.mubr.bf16.gmra.mrb[0].mxu0 %v685
        %v752 = vpop.f32.mrb[0].mxu0
        %v753 = vadd.f32 0.0, %v752
        %v754 = vpop.f32.mrb[0].mxu0
        %v755 = vpop.f32.mrb[0].mxu0
        %v756 = vadd.f32 0.0, %v755
        %v757 = vpop.f32.mrb[0].mxu0
        %758 = vmatprep.mubr.bf16.mxu0 0
        %759 = vmatmul.mubr.bf16.gmra.mrb[0].mxu0 %v688
        %v760 = vpop.f32.mrb[0].mxu0
        %v761 = vadd.f32 0.0, %v760
        %v762 = vpop.f32.mrb[0].mxu0
        %v763 = vpop.f32.mrb[0].mxu0
        %v764 = vadd.f32 0.0, %v763
        %v765 = vpop.f32.mrb[0].mxu0
        %766 = vmatprep.mubr.bf16.mxu0 0
        %767 = vmatmul.mubr.bf16.gmra.mrb[0].mxu0 %v691
        %v768 = vpop.f32.mrb[0].mxu0
        %v769 = vadd.f32 0.0, %v768
        %v770 = vpop.f32.mrb[0].mxu0
        %v771 = vpop.f32.mrb[0].mxu0
        %v772 = vadd.f32 0.0, %v771
        %v773 = vpop.f32.mrb[0].mxu0
        %774 = vmatprep.mubr.bf16.mxu0 0
        %775 = vmatmul.mubr.bf16.gmra.mrb[0].mxu0 %v694
        %v776 = vpop.f32.mrb[0].mxu0
        %v777 = vadd.f32 0.0, %v776
        %v778 = vpop.f32.mrb[0].mxu0
        %v779 = vpop.f32.mrb[0].mxu0
        %v780 = vadd.f32 0.0, %v779
        %v781 = vpop.f32.mrb[0].mxu0
        %782 = vmatprep.mubr.bf16.mxu0 0
        %783 = vmatmul.mubr.bf16.gmra.mrb[0].mxu0 %v697
        %v784 = vpop.f32.mrb[0].mxu0
        %v785 = vadd.f32 0.0, %v784
        %v786 = vpop.f32.mrb[0].mxu0
        %v787 = vpop.f32.mrb[0].mxu0
        %v788 = vadd.f32 0.0, %v787
        %v789 = vpop.f32.mrb[0].mxu0
        %790 = vmatprep.mubr.bf16.mxu0 0
        %791 = vmatmul.mubr.bf16.gmra.mrb[0].mxu0 %v700
        %v792 = vpop.f32.mrb[0].mxu0
        %v793 = vadd.f32 0.0, %v792
        %v794 = vpop.f32.mrb[0].mxu0
        %v795 = vpop.f32.mrb[0].mxu0
        %v796 = vadd.f32 0.0, %v795
        %v797 = vpop.f32.mrb[0].mxu0
        %798 = vdwg.mxu0
        %v799 = vadd.f32 %v588, %v737
        %v800 = vadd.f32 %v591, %v740
        %v801 = vadd.f32 %v596, %v745
        %v802 = vadd.f32 %v599, %v748
        %v803 = vadd.f32 %v604, %v753
        %v804 = vadd.f32 %v607, %v756
        %v805 = vadd.f32 %v612, %v761
        %v806 = vadd.f32 %v615, %v764
        %v807 = vadd.f32 %v620, %v769
        %v808 = vadd.f32 %v623, %v772
        %v809 = vadd.f32 %v628, %v777
        %v810 = vadd.f32 %v631, %v780
        %v811 = vadd.f32 %v636, %v785
        %v812 = vadd.f32 %v639, %v788
        %v813 = vadd.f32 %v644, %v793
        %v814 = vadd.f32 %v647, %v796
        %v815 = vld [vmem:[%s3] sm:$0x1]
        %v817 = vlaneseq
        %v818 = vshrl.u32 %v817, 7
        %v819 = vsub.s32 0, %v818
        %v820 = vrot.slane %v815, %v819
        %v822 = vadd.f32 %v799, %v820
        %v823 = vadd.f32 %v800, %v820
        %v824 = vadd.f32 %v801, %v820
        %v825 = vadd.f32 %v802, %v820
        %v826 = vadd.f32 %v803, %v820
        %v827 = vadd.f32 %v804, %v820
        %v828 = vadd.f32 %v805, %v820
        %v829 = vadd.f32 %v806, %v820
        %v830 = vadd.f32 %v807, %v820
        %v831 = vadd.f32 %v808, %v820
        %v832 = vadd.f32 %v809, %v820
        %v833 = vadd.f32 %v810, %v820
        %v834 = vadd.f32 %v811, %v820
        %v835 = vadd.f32 %v812, %v820
        %v836 = vadd.f32 %v813, %v820
        %v837 = vadd.f32 %v814, %v820
        %838 = vxpose.xlu0.b32.start [1/16] %v822, 128
        %839 = vxpose.xlu0.b32.cont [2/16] %v823, 128
        %840 = vxpose.xlu0.b32.cont [3/16] %v824, 128
        %841 = vxpose.xlu0.b32.cont [4/16] %v825, 128
        %842 = vxpose.xlu0.b32.cont [5/16] %v826, 128
        %843 = vxpose.xlu0.b32.cont [6/16] %v827, 128
        %844 = vxpose.xlu0.b32.cont [7/16] %v828, 128
        %845 = vxpose.xlu0.b32.cont [8/16] %v829, 128
        %846 = vxpose.xlu0.b32.cont [9/16] %v830, 128
        %847 = vxpose.xlu0.b32.cont [10/16] %v831, 128
        %848 = vxpose.xlu0.b32.cont [11/16] %v832, 128
        %849 = vxpose.xlu0.b32.cont [12/16] %v833, 128
        %850 = vxpose.xlu0.b32.cont [13/16] %v834, 128
        %851 = vxpose.xlu0.b32.cont [14/16] %v835, 128
        %852 = vxpose.xlu0.b32.cont [15/16] %v836, 128
        %853 = vxpose.xlu0.b32.end [16/16] %v837, 128
        %v854 = vpop.trf.xlu0
        %v855 = vpop.trf.xlu0
        %v856 = vpop.trf.xlu0
        %v857 = vpop.trf.xlu0
        %v858 = vpop.trf.xlu0
        %v859 = vpop.trf.xlu0
        %v860 = vpop.trf.xlu0
        %v861 = vpop.trf.xlu0
        %v862 = vpop.trf.xlu0
        %v863 = vpop.trf.xlu0
        %v864 = vpop.trf.xlu0
        %v865 = vpop.trf.xlu0
        %v866 = vpop.trf.xlu0
        %v867 = vpop.trf.xlu0
        %v868 = vpop.trf.xlu0
        %v869 = vpop.trf.xlu0
        %870 = vst [vmem:[%s248] sm:$0xff] %v854
        %871 = vst [vmem:[%s248 + $0x8] sm:$0xff] %v855
        %872 = vst [vmem:[%s248 + $0x10] sm:$0xff] %v856
        %873 = vst [vmem:[%s248 + $0x18] sm:$0xff] %v857
        %874 = vst [vmem:[%s248 + $0x20] sm:$0xff] %v858
        %875 = vst [vmem:[%s248 + $0x28] sm:$0xff] %v859
        %876 = vst [vmem:[%s248 + $0x30] sm:$0xff] %v860
        %877 = vst [vmem:[%s248 + $0x38] sm:$0xff] %v861
        %878 = vst [vmem:[%s248 + $0x40] sm:$0xff] %v862
        %879 = vst [vmem:[%s248 + $0x48] sm:$0xff] %v863
        %880 = vst [vmem:[%s248 + $0x50] sm:$0xff] %v864
        %881 = vst [vmem:[%s248 + $0x58] sm:$0xff] %v865
        %882 = vst [vmem:[%s248 + $0x60] sm:$0xff] %v866
        %883 = vst [vmem:[%s248 + $0x68] sm:$0xff] %v867
        %884 = vst [vmem:[%s248 + $0x70] sm:$0xff] %v868
        %885 = vst [vmem:[%s248 + $0x78] sm:$0xff] %v869
        %s886 = sand.u32 %s142, 1
        %s887 = scalar_lea.sflag [#allocation3], %s886
        %s888 = sand.u32 %s142, 1
        %s889 = smul.addr %s888, 128
        %s890 = scalar_lea.vmem [#allocation2], %s889
        // Predicated region
        $region37: #{tpu_custom_call.1} parent=35 // pred_check
          %p891 = pneg %p152
        $region38: #{tpu_custom_call.1} parent=35 // pred_check_branch
          %893 = sbr.rel (%p891) target = $region40
        $region39: #{tpu_custom_call.1} parent=35 // pred_region
          %s895 = ssub.s32 2048, 2048
          %896 = vsyncadd %s887, %s895
          %s897 = smul.addr %s22, 16
          %s898 = sadd.s32 %s23, %s897
          %s899 = smul.addr %s898, 128
          %s900 = scalar_lea.hbm %s4, %s899
          %s901 = sshll.u32 %s890, 4
          %s902 = int_to_ptr.vmem [resolvable:$true] %s901
          %907 = dma.vmem_to_hbm [thread:$0]  %s902, 2048, %s900, %s887, 128, 128, 8
        $region40: #{tpu_custom_call.1} parent=35 // pred_fallthru
          _
      $region36: #{tpu_custom_call.1} parent=5 // pred_fallthru
        _
      %p908 = scmp.le.s32.totalorder 2, %s13
      // Predicated region
      $region41: #{tpu_custom_call.1} parent=5 // pred_check
        %p909 = pneg %p908
      $region42: #{tpu_custom_call.1} parent=5 // pred_check_branch
        %911 = sbr.rel (%p909) target = $region44
      $region43: #{tpu_custom_call.1} parent=5 // pred_region
        %s912 = ssub.s32 %s13, 2
        // Predicated region
        $region45: #{tpu_custom_call.1} parent=43 // pred_check
          %p913 = pneg %p158
        $region46: #{tpu_custom_call.1} parent=43 // pred_check_branch
          %915 = sbr.rel (%p913) target = $region48
        $region47: #{tpu_custom_call.1} parent=43 // pred_region
          %s916 = sand.u32 %s143, 1
          %s917 = scalar_lea.sflag [#allocation3], %s916
          %s918 = sand.u32 %s143, 1
          %s919 = smul.addr %s918, 128
          %s920 = scalar_lea.vmem [#allocation2], %s919
          %921 = dma.done %s917, 2048
        $region48: #{tpu_custom_call.1} parent=43 // pred_fallthru
          _
      $region44: #{tpu_custom_call.1} parent=5 // pred_fallthru
        _
    $region6: #{tpu_custom_call.1} parent=1 // loop_footer
      %s17 = sadd.s32 1, %s13
    $region7: #{tpu_custom_call.1} parent=1 // loop_footer_branch
      %12 = sbr.rel target = $region3
    $region8: #{tpu_custom_call.1} parent=1 // loop_exit
      _
    %922 = vsyncpa [#allocation3], 1
    %s923 = scalar_lea.sflag [#allocation3], 1
    %924 = vsyncpa %s923, 1

</llo_original>
